<compile_context>
chip_gen: v5e
topology: v5e:2x2
jax: 0.10.0
libtpu: 0.0.40
codegen_flags: <defaults>
</compile_context>

<pallas_src>
import jax
import jax.numpy as jnp
from jax import lax
from jax.experimental import pallas as pl
from jax.experimental.pallas import tpu as pltpu

LANE = 128
SUBLANE = 8
CHUNK_ROWS = 1024          # rows per inner accumulation chunk (512 KiB f32 temps)
BLK_ROWS_MAX = 8192        # rows per DMA tile: (8192,128) f32 = 4 MiB per input
NUM_CORES_MAX = 2          # leading "parallel" grid axis (sharded across TCs on v7x)
VMEM_LIMIT_BYTES = 48 * 1024 * 1024


def _round_up(a, b):
    return (a + b - 1) // b * b


def _make_kernel(rows_valid, block_rows, chunk_rows, n_k):
    """rows_valid/block_rows/chunk_rows/n_k are static Python ints baked in."""
    n_chunks = block_rows // chunk_rows

    def kernel(x_ref, t_ref, out_ref):
        c = pl.program_id(0)
        k = pl.program_id(1)

        @pl.when(k == 0)
        def _init():
            out_ref[...] = jnp.zeros_like(out_ref)

        # Global first row of this grid step (scalar).  Blocks past rows_valid
        # (duplicated slots from the clamped index_map) contribute exactly 0.
        block_start = (c * n_k + k) * block_rows

        def accumulate(masked):
            def chunk_body(i, carry):
                bce_acc, inter_acc, xt_acc = carry
                off = pl.multiple_of(i * chunk_rows, chunk_rows)
                x = x_ref[pl.ds(off, chunk_rows), :].astype(jnp.float32)
                t = t_ref[pl.ds(off, chunk_rows), :].astype(jnp.float32)
                if masked:
                    # Zero the out-of-bounds rows BEFORE the logs; x=0,t=0 makes
                    # every contribution (bce, x*t, x+t) exactly 0.
                    row = lax.broadcasted_iota(jnp.int32, (chunk_rows, LANE), 0)
                    remaining = rows_valid - block_start - off
                    valid = row < remaining
                    x = jnp.where(valid, x, 0.0)
                    t = jnp.where(valid, t, 0.0)

                # torch F.binary_cross_entropy with its -100 log clamp, rewritten
                # as -(t*(log_p - log_1mp) + log_1mp); the leading negation is
                # deferred to the scalar epilogue (accumulate the un-negated sum).
                log_p = jnp.maximum(jnp.log(x), -100.0)
                log_1mp = jnp.maximum(jnp.log(1.0 - x), -100.0)
                bce_neg = t * (log_p - log_1mp) + log_1mp

                def part(v):
                    # (chunk_rows,128) -> (8,128): vreg-group adds only (VPU).
                    return jnp.sum(v.reshape(-1, SUBLANE, LANE), axis=0)

                return (bce_acc + part(bce_neg),
                        inter_acc + part(x * t),
                        xt_acc + part(x + t))

            zero = jnp.zeros((SUBLANE, LANE), jnp.float32)
            bce_acc, inter_acc, xt_acc = lax.fori_loop(
                0, n_chunks, chunk_body, (zero, zero, zero), unroll=True)
            out_ref[0, 0] += bce_acc
            out_ref[0, 1] += inter_acc
            out_ref[0, 2] += xt_acc

        is_full = block_start + block_rows <= rows_valid

        @pl.when(is_full)
        def _full_block():
            accumulate(masked=False)

        @pl.when(jnp.logical_not(is_full))
        def _tail_block():
            accumulate(masked=True)

    return kernel


def combined_loss(inputs, targets):
    """Pallas implementation of CombinedLoss.forward (returns scalar f32)."""
    x = jnp.reshape(inputs, (-1,))
    t = jnp.reshape(targets, (-1,))
    n = x.shape[0]

    rows = pl.cdiv(n, LANE)
    if rows <= CHUNK_ROWS:
        # Small tensor: one block covering everything (rounded to 8 sublanes).
        rows_k = _round_up(rows, SUBLANE)
        block_rows = rows_k
        chunk_rows = rows_k
    else:
        # Large tensor: multiple-of-CHUNK_ROWS tiles that never exceed the
        # array extent; the ragged tail is masked inside the kernel.
        rows_k = rows
        block_rows = min(BLK_ROWS_MAX, (rows // CHUNK_ROWS) * CHUNK_ROWS)
        chunk_rows = CHUNK_ROWS

    n_kernel = rows_k * LANE
    if n_kernel != n:
        # TODO(synk): this lane-alignment pad (<128 elems, or tiny tensors)
        # still costs one HBM copy; it never triggers when numel % 128 == 0
        # and rows > CHUNK_ROWS, which is the bandwidth-critical case.
        x = jnp.pad(x, (0, n_kernel - n))
        t = jnp.pad(t, (0, n_kernel - n))
    x2 = x.reshape(rows_k, LANE)
    t2 = t.reshape(rows_k, LANE)

    blocks_total = pl.cdiv(rows_k, block_rows)
    n_cores = min(NUM_CORES_MAX, blocks_total)
    n_k = pl.cdiv(blocks_total, n_cores)
    last_block = blocks_total - 1

    def in_map(c, k):
        # Clamp so no grid step ever DMAs a fully out-of-bounds block; the
        # kernel's row mask (computed from program ids) zeroes duplicate slots.
        return (jnp.minimum(c * n_k + k, last_block), 0)

    kernel = _make_kernel(rows_k, block_rows, chunk_rows, n_k)

    partials = pl.pallas_call(
        kernel,
        out_shape=jax.ShapeDtypeStruct((n_cores, 3, SUBLANE, LANE), jnp.float32),
        grid_spec=pltpu.PrefetchScalarGridSpec(
            num_scalar_prefetch=0,
            grid=(n_cores, n_k),
            in_specs=[
                pl.BlockSpec((block_rows, LANE), in_map),
                pl.BlockSpec((block_rows, LANE), in_map),
            ],
            out_specs=pl.BlockSpec(
                (1, 3, SUBLANE, LANE), lambda c, k: (c, 0, 0, 0)
            ),
        ),
        compiler_params=pltpu.CompilerParams(
            dimension_semantics=("parallel", "arbitrary"),
            vmem_limit_bytes=VMEM_LIMIT_BYTES,
        ),
    )(x2, t2)

    # Tiny epilogue in plain JAX: one cross-lane reduce of (n_cores,3,8,128).
    sums = jnp.sum(partials, axis=(0, 2, 3))  # [Σ t(lp-l1)+l1, Σ x*t, Σ (x+t)]
    bce_mean = -sums[0] / jnp.float32(n)
    smooth = 1.0
    dice_loss = 1.0 - (2.0 * sums[1] + smooth) / (sums[2] + smooth)
    return bce_mean + dice_loss


def _reference_loss(inputs, targets):
    x = jnp.reshape(inputs, (-1,)).astype(jnp.float32)
    t = jnp.reshape(targets, (-1,)).astype(jnp.float32)
    log_p = jnp.maximum(jnp.log(x), -100.0)
    log_1mp = jnp.maximum(jnp.log(1.0 - x), -100.0)
    bce = jnp.mean(-(t * log_p + (1.0 - t) * log_1mp))
    smooth = 1.0
    inter = jnp.sum(x * t)
    dice = 1.0 - (2.0 * inter + smooth) / (jnp.sum(x) + jnp.sum(t) + smooth)
    return bce + dice


if __name__ == "__main__":
    key = jax.random.PRNGKey(0)
    k1, k2 = jax.random.split(key)
    # inputs are probabilities (the torch module uses F.binary_cross_entropy,
    # not the with_logits variant); targets are {0,1} masks.
    inputs = jax.nn.sigmoid(jax.random.normal(k1, (2, 4, 16, 16), jnp.float32))
    targets = (jax.random.uniform(k2, (2, 4, 16, 16)) > 0.5).astype(jnp.float32)

    loss = combined_loss(inputs, targets)
    jax.block_until_ready(loss)

    ref = _reference_loss(inputs, targets)
    assert jnp.allclose(loss, ref, rtol=1e-5, atol=1e-5), (loss, ref)
    print("KERNEL_OK")
</pallas_src>

<mosaic_0001>
module attributes {stable_mosaic.version = 11 : i64} {
  func.func @kernel(%arg0: i32, %arg1: i32, %arg2: memref<16x128xf32, #tpu.memory_space<vmem>>, %arg3: memref<16x128xf32, #tpu.memory_space<vmem>>, %arg4: memref<1x3x8x128xf32, #tpu.memory_space<vmem>>) attributes {dimension_semantics = [#tpu.dimension_semantics<parallel>, #tpu.dimension_semantics<arbitrary>], iteration_bounds = array<i64: 1, 1>, scalar_prefetch = 0 : i64, scratch_operands = 0 : i64, tpu.core_type = #tpu.core_type<tc>, window_params = [{transform_indices = @transform_0, window_bounds = array<i64: 16, 128>}, {transform_indices = @transform_1, window_bounds = array<i64: 16, 128>}, {transform_indices = @transform_2, window_bounds = array<i64: 1, 3, 8, 128>}]} {
    %c0_i32 = arith.constant 0 : i32
    %0 = arith.cmpi eq, %arg1, %c0_i32 : i32
    %1 = arith.extui %0 : i1 to i32
    %c0_i32_0 = arith.constant 0 : i32
    %2 = arith.cmpi ne, %1, %c0_i32_0 : i32
    scf.if %2 {
      %cst = arith.constant 0.000000e+00 : f32
      %13 = vector.broadcast %cst : f32 to vector<1x3x8x128xf32>
      %c0 = arith.constant 0 : index
      %c0_5 = arith.constant 0 : index
      %c0_6 = arith.constant 0 : index
      %c0_7 = arith.constant 0 : index
      %14 = vector.load %arg4[%c0, %c0_5, %c0_6, %c0_7] : memref<1x3x8x128xf32, #tpu.memory_space<vmem>>, vector<1x3x8x128xf32>
      tpu.vector_store %arg4[%c0, %c0_5, %c0_6, %c0_7], %13 {strides = array<i32>} : memref<1x3x8x128xf32, #tpu.memory_space<vmem>>, vector<1x3x8x128xf32>,
    } else {
    }
    %c1_i32 = arith.constant 1 : i32
    %3 = arith.muli %arg0, %c1_i32 : i32
    %4 = arith.addi %3, %arg1 : i32
    %c16_i32 = arith.constant 16 : i32
    %5 = arith.muli %4, %c16_i32 : i32
    %c16_i32_1 = arith.constant 16 : i32
    %6 = arith.addi %5, %c16_i32_1 : i32
    %c16_i32_2 = arith.constant 16 : i32
    %7 = arith.cmpi sle, %6, %c16_i32_2 : i32
    %8 = arith.extui %7 : i1 to i32
    %c0_i32_3 = arith.constant 0 : i32
    %9 = arith.cmpi ne, %8, %c0_i32_3 : i32
    scf.if %9 {
      %cst = arith.constant 0.000000e+00 : f32
      %13 = vector.broadcast %cst : f32 to vector<8x128xf32>
      %c0_i32_5 = arith.constant 0 : i32
      %c16_i32_6 = arith.constant 16 : i32
      %14 = arith.muli %c0_i32_5, %c16_i32_6 : i32
      %15 = tpu.assume_multiple %14, 16 : i32
      %16 = arith.index_cast %15 : i32 to index
      %c0 = arith.constant 0 : index
      %17 = vector.load %arg2[%16, %c0] : memref<16x128xf32, #tpu.memory_space<vmem>>, vector<16x128xf32>
      %18 = arith.index_cast %15 : i32 to index
      %c0_7 = arith.constant 0 : index
      %19 = vector.load %arg3[%18, %c0_7] : memref<16x128xf32, #tpu.memory_space<vmem>>, vector<16x128xf32>
      %20 = math.log %17 : vector<16x128xf32>
      %cst_8 = arith.constant -1.000000e+02 : f32
      %21 = vector.broadcast %cst_8 : f32 to vector<16x128xf32>
      %22 = arith.maximumf %20, %21 : vector<16x128xf32>
      %cst_9 = arith.constant 1.000000e+00 : f32
      %23 = vector.broadcast %cst_9 : f32 to vector<16x128xf32>
      %24 = arith.subf %23, %17 : vector<16x128xf32>
      %25 = math.log %24 : vector<16x128xf32>
      %cst_10 = arith.constant -1.000000e+02 : f32
      %26 = vector.broadcast %cst_10 : f32 to vector<16x128xf32>
      %27 = arith.maximumf %25, %26 : vector<16x128xf32>
      %28 = arith.subf %22, %27 : vector<16x128xf32>
      %29 = arith.mulf %19, %28 : vector<16x128xf32>
      %30 = arith.addf %29, %27 : vector<16x128xf32>
      %31 = vector.shape_cast %30 : vector<16x128xf32> to vector<2x8x128xf32>
      %cst_11 = arith.constant dense<0.000000e+00> : vector<8x128xf32>
      %32 = vector.multi_reduction <add>, %31, %cst_11 [0] : vector<2x8x128xf32> to vector<8x128xf32>
      %33 = arith.addf %13, %32 : vector<8x128xf32>
      %34 = arith.mulf %17, %19 : vector<16x128xf32>
      %35 = vector.shape_cast %34 : vector<16x128xf32> to vector<2x8x128xf32>
      %cst_12 = arith.constant dense<0.000000e+00> : vector<8x128xf32>
      %36 = vector.multi_reduction <add>, %35, %cst_12 [0] : vector<2x8x128xf32> to vector<8x128xf32>
      %37 = arith.addf %13, %36 : vector<8x128xf32>
      %38 = arith.addf %17, %19 : vector<16x128xf32>
      %39 = vector.shape_cast %38 : vector<16x128xf32> to vector<2x8x128xf32>
      %cst_13 = arith.constant dense<0.000000e+00> : vector<8x128xf32>
      %40 = vector.multi_reduction <add>, %39, %cst_13 [0] : vector<2x8x128xf32> to vector<8x128xf32>
      %41 = arith.addf %13, %40 : vector<8x128xf32>
      %c1_i32_14 = arith.constant 1 : i32
      %c0_15 = arith.constant 0 : index
      %c0_16 = arith.constant 0 : index
      %c0_17 = arith.constant 0 : index
      %c0_18 = arith.constant 0 : index
      %42 = vector.load %arg4[%c0_15, %c0_16, %c0_17, %c0_18] : memref<1x3x8x128xf32, #tpu.memory_space<vmem>>, vector<1x1x8x128xf32>
      %43 = vector.shape_cast %42 : vector<1x1x8x128xf32> to vector<8x128xf32>
      %44 = arith.addf %43, %33 : vector<8x128xf32>
      %c0_19 = arith.constant 0 : index
      %c0_20 = arith.constant 0 : index
      %c0_21 = arith.constant 0 : index
      %c0_22 = arith.constant 0 : index
      %45 = vector.load %arg4[%c0_19, %c0_20, %c0_21, %c0_22] : memref<1x3x8x128xf32, #tpu.memory_space<vmem>>, vector<1x1x8x128xf32>
      %46 = vector.shape_cast %45 : vector<1x1x8x128xf32> to vector<8x128xf32>
      %47 = vector.shape_cast %44 : vector<8x128xf32> to vector<1x1x8x128xf32>
      tpu.vector_store %arg4[%c0_19, %c0_20, %c0_21, %c0_22], %47 {strides = array<i32>} : memref<1x3x8x128xf32, #tpu.memory_space<vmem>>, vector<1x1x8x128xf32>,
      %c0_23 = arith.constant 0 : index
      %c1 = arith.constant 1 : index
      %c0_24 = arith.constant 0 : index
      %c0_25 = arith.constant 0 : index
      %48 = vector.load %arg4[%c0_23, %c1, %c0_24, %c0_25] : memref<1x3x8x128xf32, #tpu.memory_space<vmem>>, vector<1x1x8x128xf32>
      %49 = vector.shape_cast %48 : vector<1x1x8x128xf32> to vector<8x128xf32>
      %50 = arith.addf %49, %37 : vector<8x128xf32>
      %c0_26 = arith.constant 0 : index
      %c1_27 = arith.constant 1 : index
      %c0_28 = arith.constant 0 : index
      %c0_29 = arith.constant 0 : index
      %51 = vector.load %arg4[%c0_26, %c1_27, %c0_28, %c0_29] : memref<1x3x8x128xf32, #tpu.memory_space<vmem>>, vector<1x1x8x128xf32>
      %52 = vector.shape_cast %51 : vector<1x1x8x128xf32> to vector<8x128xf32>
      %53 = vector.shape_cast %50 : vector<8x128xf32> to vector<1x1x8x128xf32>
      tpu.vector_store %arg4[%c0_26, %c1_27, %c0_28, %c0_29], %53 {strides = array<i32>} : memref<1x3x8x128xf32, #tpu.memory_space<vmem>>, vector<1x1x8x128xf32>,
      %c0_30 = arith.constant 0 : index
      %c2 = arith.constant 2 : index
      %c0_31 = arith.constant 0 : index
      %c0_32 = arith.constant 0 : index
      %54 = vector.load %arg4[%c0_30, %c2, %c0_31, %c0_32] : memref<1x3x8x128xf32, #tpu.memory_space<vmem>>, vector<1x1x8x128xf32>
      %55 = vector.shape_cast %54 : vector<1x1x8x128xf32> to vector<8x128xf32>
      %56 = arith.addf %55, %41 : vector<8x128xf32>
      %c0_33 = arith.constant 0 : index
      %c2_34 = arith.constant 2 : index
      %c0_35 = arith.constant 0 : index
      %c0_36 = arith.constant 0 : index
      %57 = vector.load %arg4[%c0_33, %c2_34, %c0_35, %c0_36] : memref<1x3x8x128xf32, #tpu.memory_space<vmem>>, vector<1x1x8x128xf32>
      %58 = vector.shape_cast %57 : vector<1x1x8x128xf32> to vector<8x128xf32>
      %59 = vector.shape_cast %56 : vector<8x128xf32> to vector<1x1x8x128xf32>
      tpu.vector_store %arg4[%c0_33, %c2_34, %c0_35, %c0_36], %59 {strides = array<i32>} : memref<1x3x8x128xf32, #tpu.memory_space<vmem>>, vector<1x1x8x128xf32>,
    } else {
    }
    %true = arith.constant true
    %10 = arith.xori %7, %true : i1
    %11 = arith.extui %10 : i1 to i32
    %c0_i32_4 = arith.constant 0 : i32
    %12 = arith.cmpi ne, %11, %c0_i32_4 : i32
    scf.if %12 {
      %cst = arith.constant 0.000000e+00 : f32
      %13 = vector.broadcast %cst : f32 to vector<8x128xf32>
      %c0_i32_5 = arith.constant 0 : i32
      %c16_i32_6 = arith.constant 16 : i32
      %14 = arith.muli %c0_i32_5, %c16_i32_6 : i32
      %15 = tpu.assume_multiple %14, 16 : i32
      %16 = arith.index_cast %15 : i32 to index
      %c0 = arith.constant 0 : index
      %17 = vector.load %arg2[%16, %c0] : memref<16x128xf32, #tpu.memory_space<vmem>>, vector<16x128xf32>
      %18 = arith.index_cast %15 : i32 to index
      %c0_7 = arith.constant 0 : index
      %19 = vector.load %arg3[%18, %c0_7] : memref<16x128xf32, #tpu.memory_space<vmem>>, vector<16x128xf32>
      %20 = tpu.iota {dimensions = array<i32: 0>} : vector<16x128xi32>
      %c16_i32_8 = arith.constant 16 : i32
      %21 = arith.subi %c16_i32_8, %5 : i32
      %22 = arith.subi %21, %15 : i32
      %23 = vector.broadcast %22 : i32 to vector<16x128xi32>
      %24 = arith.cmpi slt, %20, %23 : vector<16x128xi32>
      %cst_9 = arith.constant 0.000000e+00 : f32
      %25 = vector.broadcast %cst_9 : f32 to vector<16x128xf32>
      %26 = arith.select %24, %17, %25 : vector<16x128xi1>, vector<16x128xf32>
      %cst_10 = arith.constant 0.000000e+00 : f32
      %27 = vector.broadcast %cst_10 : f32 to vector<16x128xf32>
      %28 = arith.select %24, %19, %27 : vector<16x128xi1>, vector<16x128xf32>
      %29 = math.log %26 : vector<16x128xf32>
      %cst_11 = arith.constant -1.000000e+02 : f32
      %30 = vector.broadcast %cst_11 : f32 to vector<16x128xf32>
      %31 = arith.maximumf %29, %30 : vector<16x128xf32>
      %cst_12 = arith.constant 1.000000e+00 : f32
      %32 = vector.broadcast %cst_12 : f32 to vector<16x128xf32>
      %33 = arith.subf %32, %26 : vector<16x128xf32>
      %34 = math.log %33 : vector<16x128xf32>
      %cst_13 = arith.constant -1.000000e+02 : f32
      %35 = vector.broadcast %cst_13 : f32 to vector<16x128xf32>
      %36 = arith.maximumf %34, %35 : vector<16x128xf32>
      %37 = arith.subf %31, %36 : vector<16x128xf32>
      %38 = arith.mulf %28, %37 : vector<16x128xf32>
      %39 = arith.addf %38, %36 : vector<16x128xf32>
      %40 = vector.shape_cast %39 : vector<16x128xf32> to vector<2x8x128xf32>
      %cst_14 = arith.constant dense<0.000000e+00> : vector<8x128xf32>
      %41 = vector.multi_reduction <add>, %40, %cst_14 [0] : vector<2x8x128xf32> to vector<8x128xf32>
      %42 = arith.addf %13, %41 : vector<8x128xf32>
      %43 = arith.mulf %26, %28 : vector<16x128xf32>
      %44 = vector.shape_cast %43 : vector<16x128xf32> to vector<2x8x128xf32>
      %cst_15 = arith.constant dense<0.000000e+00> : vector<8x128xf32>
      %45 = vector.multi_reduction <add>, %44, %cst_15 [0] : vector<2x8x128xf32> to vector<8x128xf32>
      %46 = arith.addf %13, %45 : vector<8x128xf32>
      %47 = arith.addf %26, %28 : vector<16x128xf32>
      %48 = vector.shape_cast %47 : vector<16x128xf32> to vector<2x8x128xf32>
      %cst_16 = arith.constant dense<0.000000e+00> : vector<8x128xf32>
      %49 = vector.multi_reduction <add>, %48, %cst_16 [0] : vector<2x8x128xf32> to vector<8x128xf32>
      %50 = arith.addf %13, %49 : vector<8x128xf32>
      %c1_i32_17 = arith.constant 1 : i32
      %c0_18 = arith.constant 0 : index
      %c0_19 = arith.constant 0 : index
      %c0_20 = arith.constant 0 : index
      %c0_21 = arith.constant 0 : index
      %51 = vector.load %arg4[%c0_18, %c0_19, %c0_20, %c0_21] : memref<1x3x8x128xf32, #tpu.memory_space<vmem>>, vector<1x1x8x128xf32>
      %52 = vector.shape_cast %51 : vector<1x1x8x128xf32> to vector<8x128xf32>
      %53 = arith.addf %52, %42 : vector<8x128xf32>
      %c0_22 = arith.constant 0 : index
      %c0_23 = arith.constant 0 : index
      %c0_24 = arith.constant 0 : index
      %c0_25 = arith.constant 0 : index
      %54 = vector.load %arg4[%c0_22, %c0_23, %c0_24, %c0_25] : memref<1x3x8x128xf32, #tpu.memory_space<vmem>>, vector<1x1x8x128xf32>
      %55 = vector.shape_cast %54 : vector<1x1x8x128xf32> to vector<8x128xf32>
      %56 = vector.shape_cast %53 : vector<8x128xf32> to vector<1x1x8x128xf32>
      tpu.vector_store %arg4[%c0_22, %c0_23, %c0_24, %c0_25], %56 {strides = array<i32>} : memref<1x3x8x128xf32, #tpu.memory_space<vmem>>, vector<1x1x8x128xf32>,
      %c0_26 = arith.constant 0 : index
      %c1 = arith.constant 1 : index
      %c0_27 = arith.constant 0 : index
      %c0_28 = arith.constant 0 : index
      %57 = vector.load %arg4[%c0_26, %c1, %c0_27, %c0_28] : memref<1x3x8x128xf32, #tpu.memory_space<vmem>>, vector<1x1x8x128xf32>
      %58 = vector.shape_cast %57 : vector<1x1x8x128xf32> to vector<8x128xf32>
      %59 = arith.addf %58, %46 : vector<8x128xf32>
      %c0_29 = arith.constant 0 : index
      %c1_30 = arith.constant 1 : index
      %c0_31 = arith.constant 0 : index
      %c0_32 = arith.constant 0 : index
      %60 = vector.load %arg4[%c0_29, %c1_30, %c0_31, %c0_32] : memref<1x3x8x128xf32, #tpu.memory_space<vmem>>, vector<1x1x8x128xf32>
      %61 = vector.shape_cast %60 : vector<1x1x8x128xf32> to vector<8x128xf32>
      %62 = vector.shape_cast %59 : vector<8x128xf32> to vector<1x1x8x128xf32>
      tpu.vector_store %arg4[%c0_29, %c1_30, %c0_31, %c0_32], %62 {strides = array<i32>} : memref<1x3x8x128xf32, #tpu.memory_space<vmem>>, vector<1x1x8x128xf32>,
      %c0_33 = arith.constant 0 : index
      %c2 = arith.constant 2 : index
      %c0_34 = arith.constant 0 : index
      %c0_35 = arith.constant 0 : index
      %63 = vector.load %arg4[%c0_33, %c2, %c0_34, %c0_35] : memref<1x3x8x128xf32, #tpu.memory_space<vmem>>, vector<1x1x8x128xf32>
      %64 = vector.shape_cast %63 : vector<1x1x8x128xf32> to vector<8x128xf32>
      %65 = arith.addf %64, %50 : vector<8x128xf32>
      %c0_36 = arith.constant 0 : index
      %c2_37 = arith.constant 2 : index
      %c0_38 = arith.constant 0 : index
      %c0_39 = arith.constant 0 : index
      %66 = vector.load %arg4[%c0_36, %c2_37, %c0_38, %c0_39] : memref<1x3x8x128xf32, #tpu.memory_space<vmem>>, vector<1x1x8x128xf32>
      %67 = vector.shape_cast %66 : vector<1x1x8x128xf32> to vector<8x128xf32>
      %68 = vector.shape_cast %65 : vector<8x128xf32> to vector<1x1x8x128xf32>
      tpu.vector_store %arg4[%c0_36, %c2_37, %c0_38, %c0_39], %68 {strides = array<i32>} : memref<1x3x8x128xf32, #tpu.memory_space<vmem>>, vector<1x1x8x128xf32>,
    } else {
    }
    return
  }
  func.func @transform_0(%arg0: i32, %arg1: i32) -> (i32, i32) {
    %c1_i32 = arith.constant 1 : i32
    %0 = arith.muli %arg0, %c1_i32 : i32
    %1 = arith.addi %0, %arg1 : i32
    %c0_i32 = arith.constant 0 : i32
    %2 = arith.minsi %1, %c0_i32 : i32
    %c0_i32_0 = arith.constant 0 : i32
    %c0_i32_1 = arith.constant 0 : i32
    return %2, %c0_i32_0 : i32, i32
  }
  func.func @transform_1(%arg0: i32, %arg1: i32) -> (i32, i32) {
    %c1_i32 = arith.constant 1 : i32
    %0 = arith.muli %arg0, %c1_i32 : i32
    %1 = arith.addi %0, %arg1 : i32
    %c0_i32 = arith.constant 0 : i32
    %2 = arith.minsi %1, %c0_i32 : i32
    %c0_i32_0 = arith.constant 0 : i32
    %c0_i32_1 = arith.constant 0 : i32
    return %2, %c0_i32_0 : i32, i32
  }
  func.func @transform_2(%arg0: i32, %arg1: i32) -> (i32, i32, i32, i32) {
    %c0_i32 = arith.constant 0 : i32
    %c0_i32_0 = arith.constant 0 : i32
    %c0_i32_1 = arith.constant 0 : i32
    %c0_i32_2 = arith.constant 0 : i32
    return %arg0, %c0_i32, %c0_i32_0, %c0_i32_1 : i32, i32, i32, i32
  }
}

</mosaic_0001>

<llo_original>
// kernel: tpu_custom_call.1
$region0: #{tpu_custom_call.1}
  #allocation0 [shape = 'u32[]', space=smem, size = 0x4, offset = 0x4, fixed_abs, tag = 'smem constant byte address 0x4 - core index']
  #allocation1 [shape = 'u32[72,128]{1,0:T(1,128)}', space=vmem, size = 0x9000, scoped, tag = 'internal scratch']
  %s0 = inlined_call_operand.hbm [shape: f32[16,128], index: 0, kind: input, shape index: {}]
  %s1 = inlined_call_operand.hbm [shape: f32[16,128], index: 1, kind: input, shape index: {}]
  %s2 = inlined_call_operand.hbm [shape: f32[1,3,8,128], index: 2, kind: output, shape index: {}]
  %s3 = sld [smem:[#allocation0]]
  $region38: #{tpu_custom_call.1} parent=0
    _
  %s5 = ssub.s32 1, %s3
  %s6 = scalar_select 0, %s5, %s3
  $region1: #{tpu_custom_call.1} parent=0
    #allocation2 [shape = 'u8[8192]{0}', space=vmem, size = 0x2000, scoped, tag = 'input window, operand 0, single buffered']
    #allocation3 [shape = 's32[1]{0}', space=sflag, size = 0x4, scoped, tag = 'scoped memory for tpu_custom_call.1']
    #allocation4 [shape = 's32[1]{0}', space=sflag, size = 0x4, scoped, tag = 'scoped memory for tpu_custom_call.1']
    #allocation5 [shape = 'u8[8192]{0}', space=vmem, size = 0x2000, scoped, tag = 'input window, operand 1, single buffered']
    #allocation6 [shape = 's32[1]{0}', space=sflag, size = 0x4, scoped, tag = 'scoped memory for tpu_custom_call.1']
    #allocation7 [shape = 'u8[12288]{0}', space=vmem, size = 0x3000, scoped, tag = 'output window, operand 0, single buffered']
    %7 = vsyncpa [#allocation3], 0
    %8 = vsyncpa [#allocation6], 0
    %9 = vsyncpa [#allocation4], 0
    // Predicated region
    $region2: #{tpu_custom_call.1} parent=1 // pred_check
      _
    $region3: #{tpu_custom_call.1} parent=1 // pred_check_branch
      %11 = sbr.rel (0) target = $region5
    $region4: #{tpu_custom_call.1} parent=1 // pred_region
      %s12 = sadd.s32 0, 0
      %p13 = scmp.lt.s32.totalorder %s12, 0
      %s14 = scalar_select %p13, %s12, 0
      %s15 = smul.u32 2, %s14
      %17 = vsyncadd [#allocation3], 0
      %s18 = smul.addr %s15, 8
      %s19 = scalar_lea.hbm %s0, %s18
      %s20 = sshll.u32 %s19, 4
      %s21 = int_to_ptr.hbm [resolvable:$true] %s20
      %s22 = sshll.u32 [#allocation2], 4
      %s23 = int_to_ptr.vmem [resolvable:$true] %s22
      %28 = dma.hbm_to_vmem [thread:$0]  %s21, 256, %s23, [#allocation3], 128, 128, 8
    $region5: #{tpu_custom_call.1} parent=1 // pred_fallthru
      _
    // Predicated region
    $region6: #{tpu_custom_call.1} parent=1 // pred_check
      _
    $region7: #{tpu_custom_call.1} parent=1 // pred_check_branch
      %30 = sbr.rel (0) target = $region9
    $region8: #{tpu_custom_call.1} parent=1 // pred_region
      %s31 = sadd.s32 0, 0
      %p32 = scmp.lt.s32.totalorder %s31, 0
      %s33 = scalar_select %p32, %s31, 0
      %s34 = smul.u32 2, %s33
      %36 = vsyncadd [#allocation6], 0
      %s37 = smul.addr %s34, 8
      %s38 = scalar_lea.hbm %s1, %s37
      %s39 = sshll.u32 %s38, 4
      %s40 = int_to_ptr.hbm [resolvable:$true] %s39
      %s41 = sshll.u32 [#allocation5], 4
      %s42 = int_to_ptr.vmem [resolvable:$true] %s41
      %47 = dma.hbm_to_vmem [thread:$0]  %s40, 256, %s42, [#allocation6], 128, 128, 8
    $region9: #{tpu_custom_call.1} parent=1 // pred_fallthru
      _
    // Predicated region
    $region10: #{tpu_custom_call.1} parent=1 // pred_check
      _
    $region11: #{tpu_custom_call.1} parent=1 // pred_check_branch
      %49 = sbr.rel (0) target = $region13
    $region12: #{tpu_custom_call.1} parent=1 // pred_region
      %51 = dma.done [#allocation3], 256
    $region13: #{tpu_custom_call.1} parent=1 // pred_fallthru
      _
    // Predicated region
    $region14: #{tpu_custom_call.1} parent=1 // pred_check
      _
    $region15: #{tpu_custom_call.1} parent=1 // pred_check_branch
      %53 = sbr.rel (0) target = $region17
    $region16: #{tpu_custom_call.1} parent=1 // pred_region
      %55 = dma.done [#allocation6], 256
    $region17: #{tpu_custom_call.1} parent=1 // pred_fallthru
      _
    %s56 = sadd.s32 0, 0
    %p57 = scmp.lt.s32.totalorder %s56, 0
    %s58 = scalar_select %p57, %s56, 0
    %s59 = smul.u32 2, %s58
    %s60 = sadd.s32 0, 0
    %p61 = scmp.lt.s32.totalorder %s60, 0
    %s62 = scalar_select %p61, %s60, 0
    %s63 = smul.u32 2, %s62
    %p64 = scmp.eq.s32.totalorder 0, 0
    // Predicated region
    $region18: #{tpu_custom_call.1} parent=1 // pred_check
      %p65 = pneg %p64
    $region19: #{tpu_custom_call.1} parent=1 // pred_check_branch
      %67 = sbr.rel (%p65) target = $region21
    $region20: #{tpu_custom_call.1} parent=1 // pred_region
      %68 = vst [vmem:[#allocation7] sm:$0xff] 0.0
      %69 = vst [vmem:[#allocation7 + $0x8] sm:$0xff] 0.0
      %70 = vst [vmem:[#allocation7 + $0x10] sm:$0xff] 0.0
    $region21: #{tpu_custom_call.1} parent=1 // pred_fallthru
      _
    %s71 = sadd.s32 0, 0
    %s72 = smul.u32 %s71, 16
    %s73 = sadd.s32 %s72, 16
    %p74 = scmp.le.s32.totalorder %s73, 16
    // Predicated region
    $region22: #{tpu_custom_call.1} parent=1 // pred_check
      %p75 = pneg %p74
    $region23: #{tpu_custom_call.1} parent=1 // pred_check_branch
      %77 = sbr.rel (%p75) target = $region25
    $region24: #{tpu_custom_call.1} parent=1 // pred_region
      %v78 = vld [vmem:[#allocation2] sm:$0xff]
      %v79 = vld [vmem:[#allocation2 + $0x8] sm:$0xff]
      %v80 = vld [vmem:[#allocation5] sm:$0xff]
      %v81 = vld [vmem:[#allocation5 + $0x8] sm:$0xff]
      %v82 = vlog2.pop %v78
      %v83 = vmul.f32 %v82, 0.6931472
      %v84 = vlog2.pop %v79
      %v85 = vmul.f32 %v84, 0.6931472
      %v86 = vmax.f32 %v83, -100.0
      %v87 = vmax.f32 %v85, -100.0
      %v88 = vsub.f32 1.0, %v78
      %v89 = vsub.f32 1.0, %v79
      %v90 = vlog2.pop %v88
      %v91 = vmul.f32 %v90, 0.6931472
      %v92 = vlog2.pop %v89
      %v93 = vmul.f32 %v92, 0.6931472
      %v94 = vmax.f32 %v91, -100.0
      %v95 = vmax.f32 %v93, -100.0
      %v96 = vsub.f32 %v86, %v94
      %v97 = vsub.f32 %v87, %v95
      %v98 = vmul.f32 %v80, %v96
      %v99 = vmul.f32 %v81, %v97
      %v100 = vadd.f32 %v98, %v94
      %v101 = vadd.f32 %v99, %v95
      %v102 = vadd.f32 %v100, %v101
      %v103 = vadd.f32 %v102, 0.0
      %v104 = vmul.f32 %v78, %v80
      %v105 = vmul.f32 %v79, %v81
      %v106 = vadd.f32 %v104, %v105
      %v107 = vadd.f32 %v106, 0.0
      %v108 = vadd.f32 %v78, %v80
      %v109 = vadd.f32 %v79, %v81
      %v110 = vadd.f32 %v108, %v109
      %v111 = vadd.f32 %v110, 0.0
      %v112 = vld [vmem:[#allocation7] sm:$0xff]
      %v113 = vadd.f32 %v112, %v103
      %114 = vst [vmem:[#allocation7] sm:$0xff] %v113
      %s115 = scalar_lea.vmem [#allocation7], 8
      %v116 = vld [vmem:[%s115] sm:$0xff]
      %v117 = vadd.f32 %v116, %v107
      %118 = vst [vmem:[%s115] sm:$0xff] %v117
      %s119 = scalar_lea.vmem [#allocation7], 16
      %v120 = vld [vmem:[%s119] sm:$0xff]
      %v121 = vadd.f32 %v120, %v111
      %122 = vst [vmem:[%s119] sm:$0xff] %v121
    $region25: #{tpu_custom_call.1} parent=1 // pred_fallthru
      _
    %p123 = scmp.gt.s32.totalorder %s73, 16
    // Predicated region
    $region26: #{tpu_custom_call.1} parent=1 // pred_check
      %p124 = pneg %p123
    $region27: #{tpu_custom_call.1} parent=1 // pred_check_branch
      %126 = sbr.rel (%p124) target = $region29
    $region28: #{tpu_custom_call.1} parent=1 // pred_region
      %v127 = vld [vmem:[#allocation2] sm:$0xff]
      %v128 = vld [vmem:[#allocation2 + $0x8] sm:$0xff]
      %v129 = vld [vmem:[#allocation5] sm:$0xff]
      %v130 = vld [vmem:[#allocation5 + $0x8] sm:$0xff]
      %v131 = vlaneseq
      %v132 = vshrl.u32 %v131, 7
      %v133 = vadd.s32 %v132, 8
      %s134 = ssub.s32 16, %s72
      %s135 = ssub.s32 %s134, 0
      %v136 = vstv %s135
      %vm137 = vcmp.lt.s32.totalorder %v132, %v136
      %vm138 = vcmp.lt.s32.totalorder %v133, %v136
      %v139 = vsel %vm137, %v127, 0.0
      %v140 = vsel %vm138, %v128, 0.0
      %v141 = vsel %vm137, %v129, 0.0
      %v142 = vsel %vm138, %v130, 0.0
      %v143 = vlog2.pop %v139
      %v144 = vmul.f32 %v143, 0.6931472
      %v145 = vlog2.pop %v140
      %v146 = vmul.f32 %v145, 0.6931472
      %v147 = vmax.f32 %v144, -100.0
      %v148 = vmax.f32 %v146, -100.0
      %v149 = vsub.f32 1.0, %v139
      %v150 = vsub.f32 1.0, %v140
      %v151 = vlog2.pop %v149
      %v152 = vmul.f32 %v151, 0.6931472
      %v153 = vlog2.pop %v150
      %v154 = vmul.f32 %v153, 0.6931472
      %v155 = vmax.f32 %v152, -100.0
      %v156 = vmax.f32 %v154, -100.0
      %v157 = vsub.f32 %v147, %v155
      %v158 = vsub.f32 %v148, %v156
      %v159 = vmul.f32 %v141, %v157
      %v160 = vmul.f32 %v142, %v158
      %v161 = vadd.f32 %v159, %v155
      %v162 = vadd.f32 %v160, %v156
      %v163 = vadd.f32 %v161, %v162
      %v164 = vadd.f32 %v163, 0.0
      %v165 = vmul.f32 %v139, %v141
      %v166 = vmul.f32 %v140, %v142
      %v167 = vadd.f32 %v165, %v166
      %v168 = vadd.f32 %v167, 0.0
      %v169 = vadd.f32 %v139, %v141
      %v170 = vadd.f32 %v140, %v142
      %v171 = vadd.f32 %v169, %v170
      %v172 = vadd.f32 %v171, 0.0
      %v173 = vld [vmem:[#allocation7] sm:$0xff]
      %v174 = vadd.f32 %v173, %v164
      %175 = vst [vmem:[#allocation7] sm:$0xff] %v174
      %s176 = scalar_lea.vmem [#allocation7], 8
      %v177 = vld [vmem:[%s176] sm:$0xff]
      %v178 = vadd.f32 %v177, %v168
      %179 = vst [vmem:[%s176] sm:$0xff] %v178
      %s180 = scalar_lea.vmem [#allocation7], 16
      %v181 = vld [vmem:[%s180] sm:$0xff]
      %v182 = vadd.f32 %v181, %v172
      %183 = vst [vmem:[%s180] sm:$0xff] %v182
    $region29: #{tpu_custom_call.1} parent=1 // pred_fallthru
      _
    // Predicated region
    $region30: #{tpu_custom_call.1} parent=1 // pred_check
      _
    $region31: #{tpu_custom_call.1} parent=1 // pred_check_branch
      %185 = sbr.rel (0) target = $region33
    $region32: #{tpu_custom_call.1} parent=1 // pred_region
      %187 = vsyncadd [#allocation4], 0
      %s188 = sshll.u32 [#allocation7], 4
      %s189 = int_to_ptr.vmem [resolvable:$true] %s188
      %s190 = sshll.u32 %s2, 4
      %s191 = int_to_ptr.hbm [resolvable:$true] %s190
      %196 = dma.vmem_to_hbm [thread:$0]  %s189, 384, %s191, [#allocation4], 128, 128, 8
    $region33: #{tpu_custom_call.1} parent=1 // pred_fallthru
      _
    // Predicated region
    $region34: #{tpu_custom_call.1} parent=1 // pred_check
      _
    $region35: #{tpu_custom_call.1} parent=1 // pred_check_branch
      %198 = sbr.rel (0) target = $region37
    $region36: #{tpu_custom_call.1} parent=1 // pred_region
      %200 = dma.done [#allocation4], 384
    $region37: #{tpu_custom_call.1} parent=1 // pred_fallthru
      _
    %201 = vsyncpa [#allocation3], 1
    %202 = vsyncpa [#allocation6], 1
    %203 = vsyncpa [#allocation4], 1

</llo_original>
